<compile_context>
chip_gen: v5e
topology: v5e:2x2
jax: 0.10.0
libtpu: 0.0.40
codegen_flags: <defaults>
</compile_context>

<pallas_src>
import jax
import jax.numpy as jnp
from jax.experimental import pallas as pl
from jax.experimental.pallas import tpu as pltpu

_LANE = 128
_R_MAX = 512  # rows per slab for the multi-slab (large-N) path


def _lovasz_hinge_kernel(gts_ref, err_ref, lab_ref, tri_ref, low_ref, pos_ref,
                         out_ref, carry_ref):
    """Process one (R, 128) slab of one image's sorted (error, label) pixels."""
    b = pl.program_id(0)          # image index
    t = pl.program_id(1)          # slab index within this image

    @pl.when(t == 0)
    def _init():
        out_ref[...] = jnp.zeros_like(out_ref)
        carry_ref[...] = jnp.zeros_like(carry_ref)

    e = err_ref[...]              # (R, L) f32, hinge errors sorted descending
    g = lab_ref[...]              # (R, L) f32 in {0, 1}
    R, L = e.shape

    # ---- blocked inclusive cumsum of labels (row-major within the slab) ----
    # intra-row cumsum on the MXU; tri is a VMEM-resident constant input.
    intra = jnp.dot(g.astype(jnp.bfloat16), tri_ref[...],
                    preferred_element_type=jnp.float32)           # (R, L)

    # inter-row carry inside the slab: exclusive prefix over row totals.
    # Slice to the last column FIRST (only that column is needed).
    row_tot = intra[:, L - 1:L]                                   # (R, 1) f32
    row_prefix = jnp.dot(low_ref[...], row_tot.astype(jnp.bfloat16),
                         preferred_element_type=jnp.float32)      # (R, 1)

    carry = carry_ref[...]                                        # (1, 1)
    csum = intra + row_prefix + carry                             # global inclusive cumsum
    # running positive count for the next slab of this image
    carry_ref[...] = carry + row_prefix[R - 1:R, :] + row_tot[R - 1:R, :]

    # ---- Lovasz gradient (closed form, single reciprocal) ------------------
    gts = gts_ref[b].astype(jnp.float32)                          # #positives (scalar)

    # global 1-indexed position: resident base + per-step scalar offset
    pos = pos_ref[...] + (t * (R * L)).astype(jnp.float32)        # (R, L)

    inter = gts - csum
    union = gts + pos - csum                                      # >= 1 always
    inter_prev = inter + g                                        # csum_prev = csum - g
    union_prev = jnp.maximum(union - 1.0 + g, 1.0)                # clamp only hits pos==1

    #   pos == 1 : grad = jac            = (union - inter) / union
    #   pos  > 1 : grad = jac - jac_prev = inter_prev/union_prev - inter/union
    # combined over a common denominator -> one exact divide per element.
    num = jnp.where(pos <= 1.0, union_prev, inter_prev) * union - inter * union_prev
    grad = num * pl.reciprocal(union * union_prev, approx=False)

    contrib = jnp.maximum(e, 0.0) * grad                          # (R, L)

    # lane-distributed per-image partial sum; final lane reduce in the wrapper
    out_ref[...] += jnp.sum(contrib, axis=0, keepdims=True).reshape(1, 1, L)


def lovasz_hinge_loss(logit, truth, per_image=True):
    """Forward of Lovasz_Hinge: logit/truth are (B, 1, H, W) (NCHW, C=1)."""
    assert per_image, "only per_image=True (the module default) is implemented"
    B = logit.shape[0]
    logit2 = logit.reshape(B, -1).astype(jnp.float32)   # squeeze(1) + flatten HxW
    truth2 = truth.reshape(B, -1).astype(jnp.float32)
    N = logit2.shape[1]

    signs = 2.0 * truth2 - 1.0
    errors = 1.0 - logit2 * signs

    # per-image positive-pixel count (permutation / padding invariant)
    gts = jnp.sum(truth2, axis=1).astype(jnp.int32)     # (B,) int32 -> SMEM prefetch

    # TODO(synk): descending sort has no clean Pallas TPU primitive; done in JAX.
    neg_sorted, lab_sorted = jax.lax.sort((-errors, truth2), dimension=1, num_keys=1)
    err_sorted = -neg_sorted

    # slab geometry: one slab per image when it fits, else 512-row slabs.
    if N <= _R_MAX * _LANE:
        r_blk = max(8, pl.cdiv(N, 8 * _LANE) * 8)       # multiple of 8 sublanes
        nt = 1
    else:
        r_blk = _R_MAX
        nt = pl.cdiv(N, r_blk * _LANE)
    n_pad = nt * r_blk * _LANE
    nr = n_pad // _LANE
    pad = n_pad - N

    # pad AFTER the sort: error=0 (relu=0) and label=0 contribute exactly 0.
    if pad:
        err_sorted = jnp.pad(err_sorted, ((0, 0), (0, pad)), constant_values=0.0)
        lab_sorted = jnp.pad(lab_sorted, ((0, 0), (0, pad)), constant_values=0.0)

    err2 = err_sorted.reshape(B * nr, _LANE)
    lab2 = lab_sorted.reshape(B * nr, _LANE)

    # constants: built once on host, DMA'd once (constant index_map), VMEM-resident
    lane = jnp.arange(_LANE, dtype=jnp.int32)
    tri = (lane[:, None] <= lane[None, :]).astype(jnp.bfloat16)      # (128,128) upper-incl
    row = jnp.arange(r_blk, dtype=jnp.int32)
    low = (row[None, :] < row[:, None]).astype(jnp.bfloat16)         # (r_blk,r_blk) strict lower
    pos_base = (jnp.arange(r_blk, dtype=jnp.float32)[:, None] * _LANE
                + jnp.arange(_LANE, dtype=jnp.float32)[None, :] + 1.0)  # (r_blk,128)

    grid_spec = pltpu.PrefetchScalarGridSpec(
        num_scalar_prefetch=1,
        grid=(B, nt),
        in_specs=[
            pl.BlockSpec((r_blk, _LANE), lambda b, t, gts_ref: (b * nt + t, 0)),
            pl.BlockSpec((r_blk, _LANE), lambda b, t, gts_ref: (b * nt + t, 0)),
            pl.BlockSpec((_LANE, _LANE), lambda b, t, gts_ref: (0, 0)),
            pl.BlockSpec((r_blk, r_blk), lambda b, t, gts_ref: (0, 0)),
            pl.BlockSpec((r_blk, _LANE), lambda b, t, gts_ref: (0, 0)),
        ],
        out_specs=pl.BlockSpec((1, 1, _LANE), lambda b, t, gts_ref: (b, 0, 0)),
        scratch_shapes=[pltpu.VMEM((1, 1), jnp.float32)],
    )

    lane_losses = pl.pallas_call(
        _lovasz_hinge_kernel,
        out_shape=jax.ShapeDtypeStruct((B, 1, _LANE), jnp.float32),
        grid_spec=grid_spec,
        compiler_params=pltpu.CompilerParams(
            dimension_semantics=("parallel", "arbitrary")),
    )(gts, err2, lab2, tri, low, pos_base)

    per_img = jnp.sum(lane_losses[:, 0, :], axis=-1)    # (B,)
    return jnp.mean(per_img)


def _reference(logit, truth):
    """Pure-JAX reference of lovasz_hinge(per_image=True) for verification."""
    B = logit.shape[0]
    lg = logit.reshape(B, -1).astype(jnp.float32)
    tr = truth.reshape(B, -1).astype(jnp.float32)
    losses = []
    for b in range(B):
        l, t = lg[b], tr[b]
        signs = 2.0 * t - 1.0
        err = 1.0 - l * signs
        order = jnp.argsort(-err)
        es = err[order]
        gs = t[order]
        gts = gs.sum()
        inter = gts - jnp.cumsum(gs)
        uni = gts + jnp.cumsum(1.0 - gs)
        jac = 1.0 - inter / uni
        grad = jnp.concatenate([jac[:1], jac[1:] - jac[:-1]])
        losses.append(jnp.dot(jnp.maximum(es, 0.0), grad))
    return jnp.mean(jnp.stack(losses))


if __name__ == "__main__":
    key = jax.random.PRNGKey(0)
    k1, k2 = jax.random.split(key)
    B, C, H, W = 2, 1, 16, 16
    logit = jax.random.normal(k1, (B, C, H, W), dtype=jnp.float32)
    truth = (jax.random.uniform(k2, (B, C, H, W)) > 0.5).astype(jnp.float32)

    loss = lovasz_hinge_loss(logit, truth, per_image=True)
    loss = jax.block_until_ready(loss)

    ref = _reference(logit, truth)
    assert abs(float(loss) - float(ref)) < 1e-4, (float(loss), float(ref))
    print("KERNEL_OK")
</pallas_src>

<mosaic_0001>
module attributes {stable_mosaic.version = 11 : i64} {
  func.func @_lovasz_hinge_kernel(%arg0: i32, %arg1: i32, %arg2: memref<2xi32, #tpu.memory_space<smem>>, %arg3: memref<8x128xf32, #tpu.memory_space<vmem>>, %arg4: memref<8x128xf32, #tpu.memory_space<vmem>>, %arg5: memref<128x128xbf16, #tpu.memory_space<vmem>>, %arg6: memref<8x8xbf16, #tpu.memory_space<vmem>>, %arg7: memref<8x128xf32, #tpu.memory_space<vmem>>, %arg8: memref<1x1x128xf32, #tpu.memory_space<vmem>>, %arg9: memref<1x1xf32, #tpu.memory_space<vmem>>) attributes {dimension_semantics = [#tpu.dimension_semantics<parallel>, #tpu.dimension_semantics<arbitrary>], iteration_bounds = array<i64: 2, 1>, scalar_prefetch = 1 : i64, scratch_operands = 1 : i64, tpu.core_type = #tpu.core_type<tc>, window_params = [{transform_indices = @transform_0, window_bounds = array<i64: 8, 128>}, {transform_indices = @transform_1, window_bounds = array<i64: 8, 128>}, {pipeline_mode = #tpu.pipeline_mode<synchronous>, transform_indices = @transform_2, window_bounds = array<i64: 128, 128>}, {pipeline_mode = #tpu.pipeline_mode<synchronous>, transform_indices = @transform_3, window_bounds = array<i64: 8, 8>}, {pipeline_mode = #tpu.pipeline_mode<synchronous>, transform_indices = @transform_4, window_bounds = array<i64: 8, 128>}, {transform_indices = @transform_5, window_bounds = array<i64: 1, 1, 128>}]} {
    %c0_i32 = arith.constant 0 : i32
    %0 = arith.cmpi eq, %arg1, %c0_i32 : i32
    %1 = arith.extui %0 : i1 to i32
    %c0_i32_0 = arith.constant 0 : i32
    %2 = arith.cmpi ne, %1, %c0_i32_0 : i32
    scf.if %2 {
      %cst_26 = arith.constant 0.000000e+00 : f32
      %59 = vector.broadcast %cst_26 : f32 to vector<1x1x128xf32>
      %c0_27 = arith.constant 0 : index
      %c0_28 = arith.constant 0 : index
      %c0_29 = arith.constant 0 : index
      %60 = vector.load %arg8[%c0_27, %c0_28, %c0_29] : memref<1x1x128xf32, #tpu.memory_space<vmem>>, vector<1x1x128xf32>
      tpu.vector_store %arg8[%c0_27, %c0_28, %c0_29], %59 {strides = array<i32>} : memref<1x1x128xf32, #tpu.memory_space<vmem>>, vector<1x1x128xf32>,
      %cst_30 = arith.constant 0.000000e+00 : f32
      %61 = vector.broadcast %cst_30 : f32 to vector<1x1xf32>
      %c0_31 = arith.constant 0 : index
      %c0_32 = arith.constant 0 : index
      %62 = vector.load %arg9[%c0_31, %c0_32] : memref<1x1xf32, #tpu.memory_space<vmem>>, vector<1x1xf32>
      tpu.vector_store %arg9[%c0_31, %c0_32], %61 {strides = array<i32>} : memref<1x1xf32, #tpu.memory_space<vmem>>, vector<1x1xf32>,
    } else {
    }
    %c0 = arith.constant 0 : index
    %c0_1 = arith.constant 0 : index
    %3 = vector.load %arg3[%c0, %c0_1] : memref<8x128xf32, #tpu.memory_space<vmem>>, vector<8x128xf32>
    %c0_2 = arith.constant 0 : index
    %c0_3 = arith.constant 0 : index
    %4 = vector.load %arg4[%c0_2, %c0_3] : memref<8x128xf32, #tpu.memory_space<vmem>>, vector<8x128xf32>
    %5 = arith.truncf %4 : vector<8x128xf32> to vector<8x128xbf16>
    %c0_4 = arith.constant 0 : index
    %c0_5 = arith.constant 0 : index
    %6 = vector.load %arg5[%c0_4, %c0_5] : memref<128x128xbf16, #tpu.memory_space<vmem>>, vector<128x128xbf16>
    %cst = arith.constant dense<0.000000e+00> : vector<8x128xf32>
    %7 = tpu.matmul %5, %6, %cst {dimension_numbers = #tpu.dot_dimension_numbers<[1], [0], [0], [1], [0, 0, 1, 1], [], []>} : vector<8x128xbf16>, vector<128x128xbf16>, vector<8x128xf32> -> vector<8x128xf32>
    %8 = vector.extract_strided_slice %7 {offsets = [0, 127], sizes = [8, 1], strides = [1, 1]} : vector<8x128xf32> to vector<8x1xf32>
    %c0_6 = arith.constant 0 : index
    %c0_7 = arith.constant 0 : index
    %9 = vector.load %arg6[%c0_6, %c0_7] : memref<8x8xbf16, #tpu.memory_space<vmem>>, vector<8x8xbf16>
    %10 = arith.truncf %8 : vector<8x1xf32> to vector<8x1xbf16>
    %cst_8 = arith.constant dense<0.000000e+00> : vector<8x1xf32>
    %11 = tpu.matmul %9, %10, %cst_8 {dimension_numbers = #tpu.dot_dimension_numbers<[1], [0], [0], [1], [0, 0, 1, 1], [], []>} : vector<8x8xbf16>, vector<8x1xbf16>, vector<8x1xf32> -> vector<8x1xf32>
    %c0_9 = arith.constant 0 : index
    %c0_10 = arith.constant 0 : index
    %12 = vector.load %arg9[%c0_9, %c0_10] : memref<1x1xf32, #tpu.memory_space<vmem>>, vector<1x1xf32>
    %13 = vector.broadcast %11 : vector<8x1xf32> to vector<8x128xf32>
    %14 = arith.addf %7, %13 : vector<8x128xf32>
    %15 = vector.broadcast %12 : vector<1x1xf32> to vector<8x128xf32>
    %16 = arith.addf %14, %15 : vector<8x128xf32>
    %17 = vector.extract_strided_slice %11 {offsets = [7, 0], sizes = [1, 1], strides = [1, 1]} : vector<8x1xf32> to vector<1x1xf32>
    %18 = arith.addf %12, %17 : vector<1x1xf32>
    %19 = vector.extract_strided_slice %8 {offsets = [7, 0], sizes = [1, 1], strides = [1, 1]} : vector<8x1xf32> to vector<1x1xf32>
    %20 = arith.addf %18, %19 : vector<1x1xf32>
    %c0_11 = arith.constant 0 : index
    %c0_12 = arith.constant 0 : index
    %21 = vector.load %arg9[%c0_11, %c0_12] : memref<1x1xf32, #tpu.memory_space<vmem>>, vector<1x1xf32>
    tpu.vector_store %arg9[%c0_11, %c0_12], %20 {strides = array<i32>} : memref<1x1xf32, #tpu.memory_space<vmem>>, vector<1x1xf32>,
    %22 = arith.index_cast %arg0 : i32 to index
    %23 = memref.load %arg2[%22] : memref<2xi32, #tpu.memory_space<smem>>
    %24 = arith.sitofp %23 : i32 to f32
    %c0_13 = arith.constant 0 : index
    %c0_14 = arith.constant 0 : index
    %25 = vector.load %arg7[%c0_13, %c0_14] : memref<8x128xf32, #tpu.memory_space<vmem>>, vector<8x128xf32>
    %c1024_i32 = arith.constant 1024 : i32
    %26 = arith.muli %arg1, %c1024_i32 : i32
    %27 = arith.sitofp %26 : i32 to f32
    %28 = vector.broadcast %27 : f32 to vector<8x128xf32>
    %29 = arith.addf %25, %28 : vector<8x128xf32>
    %30 = vector.broadcast %24 : f32 to vector<8x128xf32>
    %31 = arith.subf %30, %16 : vector<8x128xf32>
    %32 = vector.broadcast %24 : f32 to vector<8x128xf32>
    %33 = arith.addf %32, %29 : vector<8x128xf32>
    %34 = arith.subf %33, %16 : vector<8x128xf32>
    %35 = arith.addf %31, %4 : vector<8x128xf32>
    %cst_15 = arith.constant 1.000000e+00 : f32
    %36 = vector.broadcast %cst_15 : f32 to vector<8x128xf32>
    %37 = arith.subf %34, %36 : vector<8x128xf32>
    %38 = arith.addf %37, %4 : vector<8x128xf32>
    %cst_16 = arith.constant 1.000000e+00 : f32
    %39 = vector.broadcast %cst_16 : f32 to vector<8x128xf32>
    %40 = arith.maximumf %38, %39 : vector<8x128xf32>
    %cst_17 = arith.constant 1.000000e+00 : f32
    %41 = vector.broadcast %cst_17 : f32 to vector<8x128xf32>
    %42 = arith.cmpf ole, %29, %41 : vector<8x128xf32>
    %43 = arith.select %42, %40, %35 : vector<8x128xi1>, vector<8x128xf32>
    %44 = arith.mulf %43, %34 : vector<8x128xf32>
    %45 = arith.mulf %31, %40 : vector<8x128xf32>
    %46 = arith.subf %44, %45 : vector<8x128xf32>
    %47 = arith.mulf %34, %40 : vector<8x128xf32>
    %48 = tpu.reciprocal %47 : vector<8x128xf32> -> vector<8x128xf32>
    %49 = arith.mulf %46, %48 : vector<8x128xf32>
    %cst_18 = arith.constant 0.000000e+00 : f32
    %50 = vector.broadcast %cst_18 : f32 to vector<8x128xf32>
    %51 = arith.maximumf %3, %50 : vector<8x128xf32>
    %52 = arith.mulf %51, %49 : vector<8x128xf32>
    %c0_19 = arith.constant 0 : index
    %c0_20 = arith.constant 0 : index
    %c0_21 = arith.constant 0 : index
    %53 = vector.load %arg8[%c0_19, %c0_20, %c0_21] : memref<1x1x128xf32, #tpu.memory_space<vmem>>, vector<1x1x128xf32>
    %cst_22 = arith.constant dense<0.000000e+00> : vector<128xf32>
    %54 = vector.multi_reduction <add>, %52, %cst_22 [0] : vector<8x128xf32> to vector<128xf32>
    %55 = vector.shape_cast %54 : vector<128xf32> to vector<1x128xf32>
    %56 = vector.shape_cast %55 : vector<1x128xf32> to vector<1x1x128xf32>
    %57 = arith.addf %53, %56 : vector<1x1x128xf32>
    %c0_23 = arith.constant 0 : index
    %c0_24 = arith.constant 0 : index
    %c0_25 = arith.constant 0 : index
    %58 = vector.load %arg8[%c0_23, %c0_24, %c0_25] : memref<1x1x128xf32, #tpu.memory_space<vmem>>, vector<1x1x128xf32>
    tpu.vector_store %arg8[%c0_23, %c0_24, %c0_25], %57 {strides = array<i32>} : memref<1x1x128xf32, #tpu.memory_space<vmem>>, vector<1x1x128xf32>,
    return
  }
  func.func @transform_0(%arg0: i32, %arg1: i32, %arg2: memref<2xi32, #tpu.memory_space<smem>>) -> (i32, i32) {
    %c1_i32 = arith.constant 1 : i32
    %0 = arith.muli %arg0, %c1_i32 : i32
    %1 = arith.addi %0, %arg1 : i32
    %c0_i32 = arith.constant 0 : i32
    %c0_i32_0 = arith.constant 0 : i32
    return %1, %c0_i32 : i32, i32
  }
  func.func @transform_1(%arg0: i32, %arg1: i32, %arg2: memref<2xi32, #tpu.memory_space<smem>>) -> (i32, i32) {
    %c1_i32 = arith.constant 1 : i32
    %0 = arith.muli %arg0, %c1_i32 : i32
    %1 = arith.addi %0, %arg1 : i32
    %c0_i32 = arith.constant 0 : i32
    %c0_i32_0 = arith.constant 0 : i32
    return %1, %c0_i32 : i32, i32
  }
  func.func @transform_2(%arg0: i32, %arg1: i32, %arg2: memref<2xi32, #tpu.memory_space<smem>>) -> (i32, i32) {
    %c0_i32 = arith.constant 0 : i32
    %c0_i32_0 = arith.constant 0 : i32
    %c0_i32_1 = arith.constant 0 : i32
    return %c0_i32, %c0_i32_0 : i32, i32
  }
  func.func @transform_3(%arg0: i32, %arg1: i32, %arg2: memref<2xi32, #tpu.memory_space<smem>>) -> (i32, i32) {
    %c0_i32 = arith.constant 0 : i32
    %c0_i32_0 = arith.constant 0 : i32
    %c0_i32_1 = arith.constant 0 : i32
    return %c0_i32, %c0_i32_0 : i32, i32
  }
  func.func @transform_4(%arg0: i32, %arg1: i32, %arg2: memref<2xi32, #tpu.memory_space<smem>>) -> (i32, i32) {
    %c0_i32 = arith.constant 0 : i32
    %c0_i32_0 = arith.constant 0 : i32
    %c0_i32_1 = arith.constant 0 : i32
    return %c0_i32, %c0_i32_0 : i32, i32
  }
  func.func @transform_5(%arg0: i32, %arg1: i32, %arg2: memref<2xi32, #tpu.memory_space<smem>>) -> (i32, i32, i32) {
    %c0_i32 = arith.constant 0 : i32
    %c0_i32_0 = arith.constant 0 : i32
    %c0_i32_1 = arith.constant 0 : i32
    return %arg0, %c0_i32, %c0_i32_0 : i32, i32, i32
  }
}

</mosaic_0001>

<llo_original>
// kernel: tpu_custom_call.1
$region0: #{tpu_custom_call.1}
  #allocation0 [shape = 'u32[]', space=smem, size = 0x4, offset = 0x4, fixed_abs, tag = 'smem constant byte address 0x4 - core index']
  #allocation1 [shape = 'u32[72,128]{1,0:T(1,128)}', space=vmem, size = 0x9000, scoped, tag = 'internal scratch']
  #allocation2 [shape = 'f32[1,1]{1,0:T(1,128)}', space=vmem, size = 0x200, scoped, tag = 'scratch operand']
  #allocation3 [shape = 's32[1]{0}', space=sflag, size = 0x4, scoped, tag = 'scoped memory for tpu_custom_call.1']
  #allocation4 [shape = 'u8[512]{0}', space=smem, size = 0x200, scoped, tag = 'prefetched SMEM operand 0']
  %s0 = inlined_call_operand.hbm [shape: s32[2], index: 0, kind: input, shape index: {}]
  %s1 = inlined_call_operand.hbm [shape: f32[16,128], index: 1, kind: input, shape index: {}]
  %s2 = inlined_call_operand.hbm [shape: f32[16,128], index: 2, kind: input, shape index: {}]
  %s3 = inlined_call_operand.hbm [shape: bf16[128,128], index: 3, kind: input, shape index: {}]
  %s4 = inlined_call_operand.hbm [shape: bf16[8,8], index: 4, kind: input, shape index: {}]
  %s5 = inlined_call_operand.hbm [shape: f32[8,128], index: 5, kind: input, shape index: {}]
  %s6 = inlined_call_operand.hbm [shape: f32[2,1,128], index: 6, kind: output, shape index: {}]
  %s7 = sld [smem:[#allocation0]]
  $region77: #{tpu_custom_call.1} parent=0
    _
  %s9 = ssub.s32 1, %s7
  %s10 = scalar_select 0, %s9, %s7
  %s12 = sshll.u32 %s0, 4
  %s13 = int_to_ptr.hbm [resolvable:$true] %s12
  %15 = dma.hbm_to_smem %s13, 16, [#allocation4], [#allocation3]
  %17 = dma.done [#allocation3], 16
  %18 = sfence
  $region1: #{tpu_custom_call.1} parent=0
    #allocation5 [shape = 'u8[8192]{0}', space=vmem, size = 0x2000, scoped, tag = 'input window, operand 1']
    #allocation6 [shape = 's32[2]{0}', space=sflag, size = 0x8, scoped, tag = 'scoped memory for tpu_custom_call.1']
    #allocation7 [shape = 's32[2]{0}', space=sflag, size = 0x8, scoped, tag = 'scoped memory for tpu_custom_call.1']
    #allocation8 [shape = 'u8[8192]{0}', space=vmem, size = 0x2000, scoped, tag = 'input window, operand 2']
    #allocation9 [shape = 's32[2]{0}', space=sflag, size = 0x8, scoped, tag = 'scoped memory for tpu_custom_call.1']
    #allocation10 [shape = 'u8[32768]{0}', space=vmem, size = 0x8000, scoped, tag = 'input window, operand 3, single buffered']
    #allocation11 [shape = 'u8[2048]{0}', space=vmem, size = 0x800, scoped, tag = 'input window, operand 4, single buffered']
    #allocation12 [shape = 's32[1]{0}', space=sflag, size = 0x4, scoped, tag = 'scoped memory for tpu_custom_call.1']
    #allocation13 [shape = 'u8[4096]{0}', space=vmem, size = 0x1000, scoped, tag = 'input window, operand 5, single buffered']
    #allocation14 [shape = 'u8[1024]{0}', space=vmem, size = 0x400, scoped, tag = 'output window, operand 0']
    %19 = vsyncpa [#allocation6], 0
    %s20 = scalar_lea.sflag [#allocation6], 1
    %21 = vsyncpa %s20, 0
    %22 = vsyncpa [#allocation9], 0
    %s23 = scalar_lea.sflag [#allocation9], 1
    %24 = vsyncpa %s23, 0
    %25 = vsyncpa [#allocation12], 0
    %26 = vsyncpa [#allocation7], 0
    %s27 = scalar_lea.sflag [#allocation7], 1
    %28 = vsyncpa %s27, 0
    loop: start=0, step=1, limit=4
    $region2: #{tpu_custom_call.1} parent=1 // loop_pre_header
      _
    $region3: #{tpu_custom_call.1} parent=1 // loop_header
      %s30 = sphi 0, %s34
      %p31 = scmp.ge.s32.totalorder %s30, 4
      %s37 = sphi 0, %s49
      %s38 = sphi 0, %s45
      %s39 = sphi 0, %s37
      %s40 = sphi 0, %s38
      %s41 = sphi 0, %s39
      %s42 = sphi 0, %s40
      %s54 = sphi 0, %s56
      %s57 = sphi 0, %s54
      %s58 = sphi 0, %s57
      %s74 = sphi 0, %s58
      %s82 = sphi 0, %s84
      %s85 = sphi 0, %s82
      %s86 = sphi 0, %s85
      %s102 = sphi 0, %s86
      %s106 = sphi 0, %s106
      %s108 = sphi 0, %s106
      %s109 = sphi 0, %s108
      %s123 = sphi 0, %s109
      %s127 = sphi 0, %s127
      %s129 = sphi 0, %s127
      %s130 = sphi 0, %s129
      %s144 = sphi 0, %s130
      %s148 = sphi 0, %s148
      %s150 = sphi 0, %s148
      %s151 = sphi 0, %s150
      %s165 = sphi 0, %s151
      %s171 = sphi 0, %s173
      %s174 = sphi 0, %s171
      %s175 = sphi 0, %s174
      %s191 = sphi 0, %s175
    $region4: #{tpu_custom_call.1} parent=1 // loop_header_branch
      %33 = sbr.rel (%p31) target = $region8
    $region5: #{tpu_custom_call.1} parent=1 // loop_body
      %s35 = ssub.s32 %s30, 1
      %s36 = ssub.s32 %s30, 2
      %s43 = sadd.s32 1, %s38
      %p44 = scmp.ge.s32.totalorder %s43, 1
      %s45 = scalar_select %p44, 0, %s43
      %s46 = sadd.s32 1, %s37
      %s47 = scalar_select %p44, %s46, %s37
      %p48 = scmp.ge.s32.totalorder %s47, 2
      %s49 = scalar_select %p48, 0, %s47
      %s50 = sadd.s32 %s37, %s38
      %s51 = sadd.s32 %s49, %s45
      %s52 = ssub.s32 %s50, %s51
      %p53 = scmp.eq.s32.totalorder %s52, 0
      %s55 = sadd.s32 %s54, 1
      %s56 = scalar_select %p53, %s54, %s55
      %p59 = pneg %p53
      %p60 = scmp.eq.s32.totalorder %s30, 1
      %p61 = por %p59, %p60
      %p62 = scmp.ne.s32.totalorder %s54, %s57
      %p63 = scmp.eq.s32.totalorder %s30, 0
      %p64 = por %p62, %p63
      %p65 = scmp.ne.s32.totalorder %s54, %s57
      %p66 = scmp.eq.s32.totalorder %s35, 1
      %p67 = por %p65, %p66
      %p68 = scmp.ne.s32.totalorder %s57, %s58
      %p69 = scmp.eq.s32.totalorder %s35, 0
      %p70 = por %p68, %p69
      %p71 = scmp.ne.s32.totalorder %s57, %s58
      %p72 = scmp.eq.s32.totalorder %s36, 1
      %p73 = por %p71, %p72
      %p75 = scmp.ne.s32.totalorder %s58, %s74
      %p76 = scmp.eq.s32.totalorder %s36, 0
      %p77 = por %p75, %p76
      %s78 = sadd.s32 %s37, %s38
      %s79 = sadd.s32 %s49, %s45
      %s80 = ssub.s32 %s78, %s79
      %p81 = scmp.eq.s32.totalorder %s80, 0
      %s83 = sadd.s32 %s82, 1
      %s84 = scalar_select %p81, %s82, %s83
      %p87 = pneg %p81
      %p88 = scmp.eq.s32.totalorder %s30, 1
      %p89 = por %p87, %p88
      %p90 = scmp.ne.s32.totalorder %s82, %s85
      %p91 = scmp.eq.s32.totalorder %s30, 0
      %p92 = por %p90, %p91
      %p93 = scmp.ne.s32.totalorder %s82, %s85
      %p94 = scmp.eq.s32.totalorder %s35, 1
      %p95 = por %p93, %p94
      %p96 = scmp.ne.s32.totalorder %s85, %s86
      %p97 = scmp.eq.s32.totalorder %s35, 0
      %p98 = por %p96, %p97
      %p99 = scmp.ne.s32.totalorder %s85, %s86
      %p100 = scmp.eq.s32.totalorder %s36, 1
      %p101 = por %p99, %p100
      %p103 = scmp.ne.s32.totalorder %s86, %s102
      %p104 = scmp.eq.s32.totalorder %s36, 0
      %p105 = por %p103, %p104
      %s107 = sadd.s32 %s106, 1
      %p110 = scmp.eq.s32.totalorder %s30, 1
      %p111 = scmp.ne.s32.totalorder %s106, %s108
      %p112 = scmp.eq.s32.totalorder %s30, 0
      %p113 = por %p111, %p112
      %p114 = scmp.ne.s32.totalorder %s106, %s108
      %p115 = scmp.eq.s32.totalorder %s35, 1
      %p116 = por %p114, %p115
      %p117 = scmp.ne.s32.totalorder %s108, %s109
      %p118 = scmp.eq.s32.totalorder %s35, 0
      %p119 = por %p117, %p118
      %p120 = scmp.ne.s32.totalorder %s108, %s109
      %p121 = scmp.eq.s32.totalorder %s36, 1
      %p122 = por %p120, %p121
      %p124 = scmp.ne.s32.totalorder %s109, %s123
      %p125 = scmp.eq.s32.totalorder %s36, 0
      %p126 = por %p124, %p125
      %s128 = sadd.s32 %s127, 1
      %p131 = scmp.eq.s32.totalorder %s30, 1
      %p132 = scmp.ne.s32.totalorder %s127, %s129
      %p133 = scmp.eq.s32.totalorder %s30, 0
      %p134 = por %p132, %p133
      %p135 = scmp.ne.s32.totalorder %s127, %s129
      %p136 = scmp.eq.s32.totalorder %s35, 1
      %p137 = por %p135, %p136
      %p138 = scmp.ne.s32.totalorder %s129, %s130
      %p139 = scmp.eq.s32.totalorder %s35, 0
      %p140 = por %p138, %p139
      %p141 = scmp.ne.s32.totalorder %s129, %s130
      %p142 = scmp.eq.s32.totalorder %s36, 1
      %p143 = por %p141, %p142
      %p145 = scmp.ne.s32.totalorder %s130, %s144
      %p146 = scmp.eq.s32.totalorder %s36, 0
      %p147 = por %p145, %p146
      %s149 = sadd.s32 %s148, 1
      %p152 = scmp.eq.s32.totalorder %s30, 1
      %p153 = scmp.ne.s32.totalorder %s148, %s150
      %p154 = scmp.eq.s32.totalorder %s30, 0
      %p155 = por %p153, %p154
      %p156 = scmp.ne.s32.totalorder %s148, %s150
      %p157 = scmp.eq.s32.totalorder %s35, 1
      %p158 = por %p156, %p157
      %p159 = scmp.ne.s32.totalorder %s150, %s151
      %p160 = scmp.eq.s32.totalorder %s35, 0
      %p161 = por %p159, %p160
      %p162 = scmp.ne.s32.totalorder %s150, %s151
      %p163 = scmp.eq.s32.totalorder %s36, 1
      %p164 = por %p162, %p163
      %p166 = scmp.ne.s32.totalorder %s151, %s165
      %p167 = scmp.eq.s32.totalorder %s36, 0
      %p168 = por %p166, %p167
      %s169 = ssub.s32 %s37, %s49
      %p170 = scmp.eq.s32.totalorder %s169, 0
      %s172 = sadd.s32 %s171, 1
      %s173 = scalar_select %p170, %s171, %s172
      %p176 = pneg %p170
      %p177 = scmp.eq.s32.totalorder %s30, 1
      %p178 = por %p176, %p177
      %p179 = scmp.ne.s32.totalorder %s171, %s174
      %p180 = scmp.eq.s32.totalorder %s30, 0
      %p181 = por %p179, %p180
      %p182 = scmp.ne.s32.totalorder %s171, %s174
      %p183 = scmp.eq.s32.totalorder %s35, 1
      %p184 = por %p182, %p183
      %p185 = scmp.ne.s32.totalorder %s174, %s175
      %p186 = scmp.eq.s32.totalorder %s35, 0
      %p187 = por %p185, %p186
      %p188 = scmp.ne.s32.totalorder %s174, %s175
      %p189 = scmp.eq.s32.totalorder %s36, 1
      %p190 = por %p188, %p189
      %p192 = scmp.ne.s32.totalorder %s175, %s191
      %p193 = scmp.eq.s32.totalorder %s36, 0
      %p194 = por %p192, %p193
      %p195 = scmp.le.s32.totalorder 1, %s30
      %p196 = scmp.lt.s32.totalorder %s30, 3
      %p197 = pnand %p195, %p196
      %p198 = pneg %p197
      // Predicated region
      $region9: #{tpu_custom_call.1} parent=5 // pred_check
        _
      $region10: #{tpu_custom_call.1} parent=5 // pred_check_branch
        %200 = sbr.rel (%p197) target = $region12
      $region11: #{tpu_custom_call.1} parent=5 // pred_region
        %s201 = ssub.s32 %s30, 1
        // Predicated region
        $region13: #{tpu_custom_call.1} parent=11 // pred_check
          %p202 = pneg %p119
        $region14: #{tpu_custom_call.1} parent=11 // pred_check_branch
          %204 = sbr.rel (%p202) target = $region16
        $region15: #{tpu_custom_call.1} parent=11 // pred_region
          %206 = vsyncadd [#allocation9], 0
          %s207 = sshll.u32 %s3, 4
          %s208 = int_to_ptr.hbm [resolvable:$true] %s207
          %s209 = sshll.u32 [#allocation10], 4
          %s210 = int_to_ptr.vmem [resolvable:$true] %s209
          %215 = dma.hbm_to_vmem [thread:$0]  %s208, 1024, %s210, [#allocation9], 64, 64, 4
        $region16: #{tpu_custom_call.1} parent=11 // pred_fallthru
          _
        // Predicated region
        $region17: #{tpu_custom_call.1} parent=11 // pred_check
          %p216 = pneg %p140
        $region18: #{tpu_custom_call.1} parent=11 // pred_check_branch
          %218 = sbr.rel (%p216) target = $region20
        $region19: #{tpu_custom_call.1} parent=11 // pred_region
          %220 = vsyncadd [#allocation12], 0
          %s222 = sshll.u32 %s4, 4
          %s223 = int_to_ptr.hbm [resolvable:$true] %s222
          %s224 = sshll.u32 [#allocation11], 4
          %s225 = int_to_ptr.vmem [resolvable:$true] %s224
          %227 = dma.hbm_to_vmem [thread:$0]  %s223, 64, %s225, [#allocation12]
        $region20: #{tpu_custom_call.1} parent=11 // pred_fallthru
          _
        // Predicated region
        $region21: #{tpu_custom_call.1} parent=11 // pred_check
          %p228 = pneg %p161
        $region22: #{tpu_custom_call.1} parent=11 // pred_check_branch
          %230 = sbr.rel (%p228) target = $region24
        $region23: #{tpu_custom_call.1} parent=11 // pred_region
          %232 = vsyncadd [#allocation12], 0
          %s234 = sshll.u32 %s5, 4
          %s235 = int_to_ptr.hbm [resolvable:$true] %s234
          %s236 = sshll.u32 [#allocation13], 4
          %s237 = int_to_ptr.vmem [resolvable:$true] %s236
          %239 = dma.hbm_to_vmem [thread:$0]  %s235, 128, %s237, [#allocation12]
        $region24: #{tpu_custom_call.1} parent=11 // pred_fallthru
          _
      $region12: #{tpu_custom_call.1} parent=5 // pred_fallthru
        _
      %p240 = scmp.lt.s32.totalorder %s30, 2
      // Predicated region
      $region25: #{tpu_custom_call.1} parent=5 // pred_check
        %p241 = pneg %p240
      $region26: #{tpu_custom_call.1} parent=5 // pred_check_branch
        %243 = sbr.rel (%p241) target = $region28
      $region27: #{tpu_custom_call.1} parent=5 // pred_region
        // Predicated region
        $region29: #{tpu_custom_call.1} parent=27 // pred_check
          %p244 = pneg %p64
        $region30: #{tpu_custom_call.1} parent=27 // pred_check_branch
          %246 = sbr.rel (%p244) target = $region32
        $region31: #{tpu_custom_call.1} parent=27 // pred_region
          %s247 = sand.u32 %s54, 1
          %s248 = scalar_lea.sflag [#allocation6], %s247
          %s249 = sand.u32 %s54, 1
          %s250 = smul.addr %s249, 8
          %s251 = scalar_lea.vmem [#allocation5], %s250
          %s252 = sadd.s32 %s37, %s38
          %254 = vsyncadd %s248, 0
          %s255 = smul.addr %s252, 8
          %s256 = scalar_lea.hbm %s1, %s255
          %s258 = sshll.u32 %s256, 4
          %s259 = int_to_ptr.hbm [resolvable:$true] %s258
          %s260 = sshll.u32 %s251, 4
          %s261 = int_to_ptr.vmem [resolvable:$true] %s260
          %263 = dma.hbm_to_vmem [thread:$0]  %s259, 128, %s261, %s248
        $region32: #{tpu_custom_call.1} parent=27 // pred_fallthru
          _
        // Predicated region
        $region33: #{tpu_custom_call.1} parent=27 // pred_check
          %p264 = pneg %p92
        $region34: #{tpu_custom_call.1} parent=27 // pred_check_branch
          %266 = sbr.rel (%p264) target = $region36
        $region35: #{tpu_custom_call.1} parent=27 // pred_region
          %s267 = sand.u32 %s30, 1
          %s268 = scalar_lea.sflag [#allocation9], %s267
          %s269 = sand.u32 %s82, 1
          %s270 = smul.addr %s269, 8
          %s271 = scalar_lea.vmem [#allocation8], %s270
          %s272 = sadd.s32 %s37, %s38
          %274 = vsyncadd %s268, 0
          %s275 = smul.addr %s272, 8
          %s276 = scalar_lea.hbm %s2, %s275
          %s278 = sshll.u32 %s276, 4
          %s279 = int_to_ptr.hbm [resolvable:$true] %s278
          %s280 = sshll.u32 %s271, 4
          %s281 = int_to_ptr.vmem [resolvable:$true] %s280
          %283 = dma.hbm_to_vmem [thread:$0]  %s279, 128, %s281, %s268
        $region36: #{tpu_custom_call.1} parent=27 // pred_fallthru
          _
      $region28: #{tpu_custom_call.1} parent=5 // pred_fallthru
        _
      %p284 = scmp.le.s32.totalorder 1, %s30
      %p285 = scmp.lt.s32.totalorder %s30, 3
      %p286 = pnand %p284, %p285
      %p287 = pneg %p286
      // Predicated region
      $region37: #{tpu_custom_call.1} parent=5 // pred_check
        _
      $region38: #{tpu_custom_call.1} parent=5 // pred_check_branch
        %289 = sbr.rel (%p286) target = $region40
      $region39: #{tpu_custom_call.1} parent=5 // pred_region
        %s290 = ssub.s32 %s30, 1
        %s291 = sand.u32 %s57, 1
        %s292 = scalar_lea.sflag [#allocation6], %s291
        %s293 = sand.u32 %s57, 1
        %s294 = smul.addr %s293, 8
        %s295 = scalar_lea.vmem [#allocation5], %s294
        // Predicated region
        $region41: #{tpu_custom_call.1} parent=39 // pred_check
          %p296 = pneg %p70
        $region42: #{tpu_custom_call.1} parent=39 // pred_check_branch
          %298 = sbr.rel (%p296) target = $region44
        $region43: #{tpu_custom_call.1} parent=39 // pred_region
          %300 = dma.done %s292, 128
        $region44: #{tpu_custom_call.1} parent=39 // pred_fallthru
          _
        %s301 = sand.u32 %s35, 1
        %s302 = scalar_lea.sflag [#allocation9], %s301
        %s303 = sand.u32 %s85, 1
        %s304 = smul.addr %s303, 8
        %s305 = scalar_lea.vmem [#allocation8], %s304
        // Predicated region
        $region45: #{tpu_custom_call.1} parent=39 // pred_check
          %p306 = pneg %p98
        $region46: #{tpu_custom_call.1} parent=39 // pred_check_branch
          %308 = sbr.rel (%p306) target = $region48
        $region47: #{tpu_custom_call.1} parent=39 // pred_region
          %310 = dma.done %s302, 128
        $region48: #{tpu_custom_call.1} parent=39 // pred_fallthru
          _
        // Predicated region
        $region49: #{tpu_custom_call.1} parent=39 // pred_check
          %p311 = pneg %p119
        $region50: #{tpu_custom_call.1} parent=39 // pred_check_branch
          %313 = sbr.rel (%p311) target = $region52
        $region51: #{tpu_custom_call.1} parent=39 // pred_region
          %315 = dma.done [#allocation9], 1024
        $region52: #{tpu_custom_call.1} parent=39 // pred_fallthru
          _
        // Predicated region
        $region53: #{tpu_custom_call.1} parent=39 // pred_check
          %p316 = pneg %p140
        $region54: #{tpu_custom_call.1} parent=39 // pred_check_branch
          %318 = sbr.rel (%p316) target = $region56
        $region55: #{tpu_custom_call.1} parent=39 // pred_region
          %320 = dma.done [#allocation12], 64
        $region56: #{tpu_custom_call.1} parent=39 // pred_fallthru
          _
        // Predicated region
        $region57: #{tpu_custom_call.1} parent=39 // pred_check
          %p321 = pneg %p161
        $region58: #{tpu_custom_call.1} parent=39 // pred_check_branch
          %323 = sbr.rel (%p321) target = $region60
        $region59: #{tpu_custom_call.1} parent=39 // pred_region
          %325 = dma.done [#allocation12], 128
        $region60: #{tpu_custom_call.1} parent=39 // pred_fallthru
          _
        %s326 = sand.u32 %s57, 1
        %s327 = scalar_lea.sflag [#allocation6], %s326
        %s328 = sand.u32 %s57, 1
        %s329 = smul.addr %s328, 8
        %s330 = scalar_lea.vmem [#allocation5], %s329
        %p331 = pneg %p70
        %p332 = pneg %p67
        %s333 = sand.u32 %s35, 1
        %s334 = scalar_lea.sflag [#allocation9], %s333
        %s335 = sand.u32 %s85, 1
        %s336 = smul.addr %s335, 8
        %s337 = scalar_lea.vmem [#allocation8], %s336
        %p338 = pneg %p98
        %p339 = pneg %p95
        %p340 = pneg %p119
        %p341 = pneg %p116
        %p342 = pneg %p140
        %p343 = pneg %p137
        %p344 = pneg %p161
        %p345 = pneg %p158
        %p346 = pneg %p187
        %p347 = pneg %p184
        %s348 = sand.u32 %s174, 1
        %s349 = scalar_lea.sflag [#allocation7], %s348
        %s350 = sand.u32 %s174, 1
        %s351 = scalar_lea.vmem [#allocation14], %s350
        %s352 = sadd.s32 %s39, %s40
        %s353 = sadd.s32 %s39, %s40
        %p355 = scmp.eq.s32.totalorder %s40, 0
        // Predicated region
        $region61: #{tpu_custom_call.1} parent=39 // pred_check
          %p356 = pneg %p355
        $region62: #{tpu_custom_call.1} parent=39 // pred_check_branch
          %358 = sbr.rel (%p356) target = $region64
        $region63: #{tpu_custom_call.1} parent=39 // pred_region
          %359 = vst [vmem:[%s351] sm:$0x1] 0.0
          %vm360 = vcmask 0
          %361 = vst.msk [vmem:[#allocation2] sm:$0x1] %vm360, 0.0
        $region64: #{tpu_custom_call.1} parent=39 // pred_fallthru
          _
        %v362 = vld [vmem:[%s295] sm:$0xff]
        %v363 = vld [vmem:[%s305] sm:$0xff]
        %v364 = vpack.c.bf16 %v363, %v363
        %v365 = vld [vmem:[#allocation10] sm:$0xf]
        %v366 = vld [vmem:[#allocation10 + $0x4] sm:$0xf]
        %v367 = vld [vmem:[#allocation10 + $0x8] sm:$0xf]
        %v368 = vld [vmem:[#allocation10 + $0xc] sm:$0xf]
        %v369 = vld [vmem:[#allocation10 + $0x10] sm:$0xf]
        %v370 = vld [vmem:[#allocation10 + $0x14] sm:$0xf]
        %v371 = vld [vmem:[#allocation10 + $0x18] sm:$0xf]
        %v372 = vld [vmem:[#allocation10 + $0x1c] sm:$0xf]
        %v373 = vld [vmem:[#allocation10 + $0x20] sm:$0xf]
        %v374 = vld [vmem:[#allocation10 + $0x24] sm:$0xf]
        %v375 = vld [vmem:[#allocation10 + $0x28] sm:$0xf]
        %v376 = vld [vmem:[#allocation10 + $0x2c] sm:$0xf]
        %v377 = vld [vmem:[#allocation10 + $0x30] sm:$0xf]
        %v378 = vld [vmem:[#allocation10 + $0x34] sm:$0xf]
        %v379 = vld [vmem:[#allocation10 + $0x38] sm:$0xf]
        %v380 = vld [vmem:[#allocation10 + $0x3c] sm:$0xf]
        %v397 = vunpack.c.l.b16 %v365
        %v398 = vunpack.c.l.b16 %v366
        %v399 = vunpack.c.l.b16 %v367
        %v400 = vunpack.c.l.b16 %v368
        %v401 = vunpack.c.l.b16 %v369
        %v402 = vunpack.c.l.b16 %v370
        %v403 = vunpack.c.l.b16 %v371
        %v404 = vunpack.c.l.b16 %v372
        %v405 = vunpack.c.l.b16 %v373
        %v406 = vunpack.c.l.b16 %v374
        %v407 = vunpack.c.l.b16 %v375
        %v408 = vunpack.c.l.b16 %v376
        %v409 = vunpack.c.l.b16 %v377
        %v410 = vunpack.c.l.b16 %v378
        %v411 = vunpack.c.l.b16 %v379
        %v412 = vunpack.c.l.b16 %v380
        %v413 = vpack.c.b16 %v398, %v397
        %v414 = vpack.c.b16 %v400, %v399
        %v415 = vpack.c.b16 %v402, %v401
        %v416 = vpack.c.b16 %v404, %v403
        %v417 = vpack.c.b16 %v406, %v405
        %v418 = vpack.c.b16 %v408, %v407
        %v419 = vpack.c.b16 %v410, %v409
        %v420 = vpack.c.b16 %v412, %v411
        %429 = vmatpush.bf16.msra.mxu0 %v420
        %430 = vmatpush.bf16.msra.mxu0 %v419
        %431 = vmatpush.bf16.msra.mxu0 %v418
        %432 = vmatpush.bf16.msra.mxu0 %v417
        %433 = vmatpush.bf16.msra.mxu0 %v416
        %434 = vmatpush.bf16.msra.mxu0 %v415
        %435 = vmatpush.bf16.msra.mxu0 %v414
        %436 = vmatpush.bf16.msra.mxu0 %v413
        %437 = vmatmul.bf16.gmra.mxu0 %v364
        %v438 = vpop.f32.mrf.mxu0
        %v439 = vadd.f32 0.0, %v438
        %v440 = vpop.f32.mrf.mxu0
        %441 = vdwg.mxu0
        %v442 = vld [vmem:[#allocation11] sm:$0xf]
        %v443 = vpack.c.bf16 %v439, %v439
        %445 = vrot.lane.b32.xlu0 %v443, 1
        %v446 = vpop.permute.xlu0 %445
        %vm447 = vcmask 64512
        %v449 = vsel %vm447, %v442, 0
        %vm451 = vcmask 1043456
        %v453 = vsel %vm451, %v446, 0
        %455 = vmatpush.bf16.msra.mxu0 0
        %456 = vmatpush.bf16.msra.mxu0 0
        %457 = vmatpush.bf16.msra.mxu0 0
        %458 = vmatpush.bf16.msra.mxu0 0
        %459 = vmatpush.bf16.msra.mxu0 0
        %460 = vmatpush.bf16.msra.mxu0 0
        %461 = vmatpush.bf16.msra.mxu0 0
        %462 = vmatpush.bf16.msra.mxu0 %v453
        %463 = vmatmul.bf16.gmra.mxu0 %v449
        %v464 = vpop.f32.mrf.mxu0
        %v465 = vadd.f32 0.0, %v464
        %v466 = vpop.f32.mrf.mxu0
        %467 = vdwg.mxu0
        %v468 = vld [vmem:[#allocation2] sm:$0x1]
        %470 = vset.pattern.permute.xlu0 0
        %471 = vperm.xlu0 %470, %v465
        %v472 = vpop.permute.xlu0 %471
        %v474 = vadd.f32 %v439, %v472
        %v476 = vperm.slane %v468, 0
        %477 = vset.pattern.permute.xlu0 0
        %478 = vperm.xlu0 %477, %v476
        %v479 = vpop.permute.xlu0 %478
        %v481 = vadd.f32 %v474, %v479
        %482 = vst [vmem:[#allocation1] sm:$0xff] %v465
        %s483 = scalar_lea.vmem [#allocation1], 7
        %v484 = vld [vmem:[%s483] ss:$9 sm:$0xff]
        %v486 = vadd.f32 %v468, %v484
        %488 = vst [vmem:[#allocation1] sm:$0xff] %v439
        %s489 = scalar_lea.vmem [#allocation1], 7
        %v490 = vld [vmem:[%s489] ss:$9 sm:$0xff]
        %491 = vrot.lane.b32.xlu0 %v490, 1
        %v492 = vpop.permute.xlu0 %491
        %v494 = vadd.f32 %v486, %v492
        %vm495 = vcmask 0
        %496 = vst.msk [vmem:[#allocation2] sm:$0x1] %vm495, %v494
        %s497 = sld [smem:[#allocation4 + %s39]]
        %s498 = scvt.s32.f32 %s497
        %v499 = vld [vmem:[#allocation13] sm:$0xff]
        %s500 = smul.u32 %s40, 1024
        %s501 = scvt.s32.f32 %s500
        %v502 = vstv %s501
        %v503 = vadd.f32 %v499, %v502
        %v504 = vstv %s498
        %v505 = vsub.f32 %v504, %v481
        %v506 = vadd.f32 %v504, %v503
        %v507 = vsub.f32 %v506, %v481
        %v508 = vadd.f32 %v505, %v363
        %v509 = vsub.f32 %v507, 1.0
        %v510 = vadd.f32 %v509, %v363
        %v511 = vmax.f32 %v510, 1.0
        %vm512 = vcmp.le.f32.partialorder %v503, 1.0
        %v513 = vsel %vm512, %v511, %v508
        %v514 = vmul.f32 %v513, %v507
        %v515 = vmul.f32 %v505, %v511
        %v516 = vsub.f32 %v514, %v515
        %v517 = vmul.f32 %v507, %v511
        %v518 = vrcp.pop %v517
        %v519 = vmul.f32 %v517, %v518
        %v520 = vsub.f32 1.0, %v519
        %v521 = vmul.f32 %v518, %v520
        %v522 = vadd.f32 %v518, %v521
        %vm523 = vweird.f32 %v517
        %vm524 = vweird.f32 %v518
        %vm525 = vmor %vm523, %vm524
        %v526 = vsel %vm525, %v518, %v522
        %v527 = vand.u32 2147483647, %v517
        %vm528 = vcmp.eq.f32.partialorder %v527, 8.507059e+37
        %v529 = vand.u32 %v517, 2147483648
        %v530 = vor.u32 1.1754944e-38, %v529
        %v531 = vsel %vm528, %v530, %v526
        %v532 = vmul.f32 %v516, %v531
        %v533 = vmax.f32 %v362, 0.0
        %v534 = vmul.f32 %v533, %v532
        %v535 = vld [vmem:[%s351] sm:$0x1]
        %v536 = vrot.slane %v534, 4
        %v537 = vadd.f32 %v534, %v536
        %v538 = vrot.slane %v537, 2
        %v539 = vadd.f32 %v537, %v538
        %v540 = vrot.slane %v539, 1
        %v541 = vadd.f32 %v539, %v540
        %v542 = vadd.f32 %v535, %v541
        %543 = vst [vmem:[%s351] sm:$0x1] %v542
        %s544 = sand.u32 %s174, 1
        %s545 = scalar_lea.sflag [#allocation7], %s544
        %s546 = sand.u32 %s174, 1
        %s547 = scalar_lea.vmem [#allocation14], %s546
        // Predicated region
        $region65: #{tpu_custom_call.1} parent=39 // pred_check
          %p548 = pneg %p184
        $region66: #{tpu_custom_call.1} parent=39 // pred_check_branch
          %550 = sbr.rel (%p548) target = $region68
        $region67: #{tpu_custom_call.1} parent=39 // pred_region
          %552 = vsyncadd %s545, 0
          %s553 = scalar_lea.hbm %s6, %s39
          %s555 = sshll.u32 %s547, 4
          %s556 = int_to_ptr.vmem [resolvable:$true] %s555
          %s557 = sshll.u32 %s553, 4
          %s558 = int_to_ptr.hbm [resolvable:$true] %s557
          %560 = dma.vmem_to_hbm [thread:$0]  %s556, 16, %s558, %s545
        $region68: #{tpu_custom_call.1} parent=39 // pred_fallthru
          _
      $region40: #{tpu_custom_call.1} parent=5 // pred_fallthru
        _
      %p561 = scmp.le.s32.totalorder 2, %s30
      // Predicated region
      $region69: #{tpu_custom_call.1} parent=5 // pred_check
        %p562 = pneg %p561
      $region70: #{tpu_custom_call.1} parent=5 // pred_check_branch
        %564 = sbr.rel (%p562) target = $region72
      $region71: #{tpu_custom_call.1} parent=5 // pred_region
        %s565 = ssub.s32 %s30, 2
        // Predicated region
        $region73: #{tpu_custom_call.1} parent=71 // pred_check
          %p566 = pneg %p190
        $region74: #{tpu_custom_call.1} parent=71 // pred_check_branch
          %568 = sbr.rel (%p566) target = $region76
        $region75: #{tpu_custom_call.1} parent=71 // pred_region
          %s569 = sand.u32 %s175, 1
          %s570 = scalar_lea.sflag [#allocation7], %s569
          %s571 = sand.u32 %s175, 1
          %s572 = scalar_lea.vmem [#allocation14], %s571
          %574 = dma.done %s570, 16
        $region76: #{tpu_custom_call.1} parent=71 // pred_fallthru
          _
      $region72: #{tpu_custom_call.1} parent=5 // pred_fallthru
        _
    $region6: #{tpu_custom_call.1} parent=1 // loop_footer
      %s34 = sadd.s32 1, %s30
    $region7: #{tpu_custom_call.1} parent=1 // loop_footer_branch
      %29 = sbr.rel target = $region3
    $region8: #{tpu_custom_call.1} parent=1 // loop_exit
      _
    %575 = vsyncpa [#allocation6], 1
    %s576 = scalar_lea.sflag [#allocation6], 1
    %577 = vsyncpa %s576, 1
    %578 = vsyncpa [#allocation9], 1
    %s579 = scalar_lea.sflag [#allocation9], 1
    %580 = vsyncpa %s579, 1
    %581 = vsyncpa [#allocation12], 1
    %582 = vsyncpa [#allocation7], 1
    %s583 = scalar_lea.sflag [#allocation7], 1
    %584 = vsyncpa %s583, 1

</llo_original>
